<compile_context>
chip_gen: v5e
topology: v5e:2x2
jax: 0.10.0
libtpu: 0.0.40
codegen_flags: <defaults>
</compile_context>

<pallas_src>
import jax
import jax.numpy as jnp
from jax.experimental import pallas as pl
from jax.experimental.pallas import tpu as pltpu


def _round_up(x, m):
    return (x + m - 1) // m * m


def _pick_tiles(n, tm_req, tk_req):
    """Adaptive tile sizes.

    Row tile: multiple of 8 (sublane), shrunk so the 'parallel' row axis has at
    least 2 (even) tiles when N allows it -> both v7x TensorCores get work.
    Column (reduction) tile: multiple of 128 (lane), capped at the padded N.
    """
    tm = min(tm_req, _round_up(n, 8))
    if n > 8 and _round_up(n, tm) // tm < 2:
        tm = _round_up((n + 1) // 2, 8)
    tm = max(tm, 8)
    tk = max(min(tk_req, _round_up(n, 128)), 128)
    return tm, tk


def _graphsage_kernel(adj_ref, nfeat_ref, sfeat_ref, ws_ref, wn_ref, out_ref,
                      acc_ref):
    """Grid: (row tile i, reduction tile k). Output resident across k."""
    k = pl.program_id(1)

    @pl.when(k == 0)
    def _():
        acc_ref[...] = jnp.zeros_like(acc_ref)

    # Partial neighbor-sum (MXU, f32 accumulate).  The last feature lane of
    # nfeat is all-ones, so the node degree accumulates in acc[:, -1] for free
    # (no per-step f32 cast of the adj tile, no XLU row-reduce, no 2nd scratch).
    acc_ref[...] += jnp.dot(adj_ref[...], nfeat_ref[...],
                            preferred_element_type=jnp.float32)

    @pl.when(k == pl.num_programs(1) - 1)
    def _():
        fp = acc_ref.shape[-1]
        acc = acc_ref[...]                                   # (TM, Fp) f32
        deg = acc[:, fp - 1:fp]                              # ones-column degree
        # Mean aggregation: EUP reciprocal instead of a VALU divide.
        inv_deg = pl.reciprocal(jnp.maximum(deg, 1.0), approx=True)
        neigh = (acc * inv_deg).astype(nfeat_ref.dtype)      # (TM, Fp) bf16
        # Two K=Fp lane-dense MXU matmuls; no (TM, 2*Fp) concatenate temp.
        h = jnp.dot(sfeat_ref[...], ws_ref[...],
                    preferred_element_type=jnp.float32)
        h = h + jnp.dot(neigh, wn_ref[...],
                        preferred_element_type=jnp.float32)
        out_ref[...] = jnp.maximum(h, 0.0).astype(out_ref.dtype)   # ReLU


def prepare_graphsage_inputs(adj, feats, w_self, w_neigh, *, tm=512, tk=512,
                             compute_dtype=jnp.bfloat16):
    """One-time padding / casting step.

    Hoist this out of the per-call path (run once at data-prep time and cache
    the result): it reads the f32 N x N adjacency and writes a bf16 copy, which
    is ~1.5x the kernel's own adjacency HBM traffic if repeated every forward.
    """
    N, F = feats.shape
    D, F2 = w_self.shape
    assert F2 == F and w_neigh.shape == (D, F)

    tm, tk = _pick_tiles(N, tm, tk)
    Nr = _round_up(N, tm)            # adjacency rows padded to the row tile
    Nc = _round_up(N, tk)            # adjacency cols padded to the reduction tile
    Fp = _round_up(F + 1, 128)       # lane-dense; +1 spare lane for the ones column
    Dp = _round_up(D, 128)           # lane-dense output dim

    # Binary 0/1 adjacency is exact in bf16; padded rows/cols are zero.
    adj_p = jnp.zeros((Nr, Nc), compute_dtype).at[:N, :N].set(
        adj.astype(compute_dtype))

    # Neighbor-side features (indexed by adjacency columns).  Last lane = 1.0
    # so deg = (adj @ nfeats)[:, -1]; padded adj entries are zero, so padded
    # feature rows never contaminate the degree.
    nfeats = jnp.zeros((Nc, Fp), compute_dtype)
    nfeats = nfeats.at[:N, :F].set(feats.astype(compute_dtype))
    nfeats = nfeats.at[:, Fp - 1].set(jnp.asarray(1.0, compute_dtype))

    # Self-side features (indexed by adjacency rows).
    sfeats = jnp.zeros((Nr, Fp), compute_dtype).at[:N, :F].set(
        feats.astype(compute_dtype))

    # Pre-transposed, zero-padded weights: pad rows (>= F, incl. the ones lane)
    # are zero, so feature padding contributes nothing to the projection.
    w_self_t = jnp.zeros((Fp, Dp), compute_dtype).at[:F, :D].set(
        w_self.T.astype(compute_dtype))
    w_neigh_t = jnp.zeros((Fp, Dp), compute_dtype).at[:F, :D].set(
        w_neigh.T.astype(compute_dtype))

    return dict(adj=adj_p, nfeats=nfeats, sfeats=sfeats,
                w_self_t=w_self_t, w_neigh_t=w_neigh_t,
                tm=tm, tk=tk, n=N, d=D)


def graphsage_encode(prep, *, out_dtype=jnp.float32):
    """Runs the Pallas kernel on prepared inputs.

    Returns embeds of shape (num_nodes, 1, embed_dim), matching
    enc(adjs).transpose(0, 1).unsqueeze(1).
    """
    adj_p, nfeats, sfeats = prep["adj"], prep["nfeats"], prep["sfeats"]
    w_self_t, w_neigh_t = prep["w_self_t"], prep["w_neigh_t"]
    tm, tk, N, D = prep["tm"], prep["tk"], prep["n"], prep["d"]

    Nr, Nc = adj_p.shape
    Fp = nfeats.shape[1]
    Dp = w_self_t.shape[1]
    n_row_tiles = Nr // tm
    n_col_tiles = Nc // tk

    in_bytes = jnp.dtype(adj_p.dtype).itemsize
    out_bytes = jnp.dtype(out_dtype).itemsize

    # Advisory cost so XLA schedules surrounding ops around a right-sized call.
    cost = pl.CostEstimate(
        flops=2 * Nr * Nc * Fp + 2 * 2 * Nr * Fp * Dp,
        transcendentals=Nr,
        bytes_accessed=(Nr * Nc * in_bytes                      # adjacency stream
                        + Nc * Fp * in_bytes * n_row_tiles      # nfeats re-read / row tile
                        + Nr * Fp * in_bytes                    # self feats
                        + 2 * Fp * Dp * in_bytes                # weights (loaded once)
                        + Nr * Dp * out_bytes))                 # output writeback

    # Double-buffered inputs/outputs + f32 accumulator, 2x headroom.
    # Floor 32 MiB (safe on every generation), cap 100 MiB (v6e/v5e headroom).
    vmem_est = (2 * (tm * tk + tk * Fp + tm * Fp + 2 * Fp * Dp) * in_bytes
                + 2 * tm * Dp * out_bytes
                + tm * Fp * 4)
    vmem_limit = int(min(max(2 * vmem_est, 32 * 1024 * 1024),
                         100 * 1024 * 1024))

    h = pl.pallas_call(
        _graphsage_kernel,
        out_shape=jax.ShapeDtypeStruct((Nr, Dp), out_dtype),
        grid=(n_row_tiles, n_col_tiles),
        in_specs=[
            pl.BlockSpec((tm, tk), lambda i, k: (i, k)),     # adj tile
            pl.BlockSpec((tk, Fp), lambda i, k: (k, 0)),     # neighbor feats (+ ones lane)
            pl.BlockSpec((tm, Fp), lambda i, k: (i, 0)),     # self feats
            # NOTE(v7x): these constant-index weight operands are double-buffered
            # by the pipeline; for large Fp*Dp single-buffer them
            # (pipeline_mode=pl.Buffered(1)) or tile Dp to fit the 64 MiB VMEM.
            pl.BlockSpec((Fp, Dp), lambda i, k: (0, 0)),     # W_self^T
            pl.BlockSpec((Fp, Dp), lambda i, k: (0, 0)),     # W_neigh^T
        ],
        out_specs=pl.BlockSpec((tm, Dp), lambda i, k: (i, 0)),
        scratch_shapes=[pltpu.VMEM((tm, Fp), jnp.float32)],  # neighbor-sum (+deg) acc
        compiler_params=pltpu.CompilerParams(
            dimension_semantics=("parallel", "arbitrary"),
            vmem_limit_bytes=vmem_limit),
        cost_estimate=cost,
    )(adj_p, nfeats, sfeats, w_self_t, w_neigh_t)

    # (N, D) layout already == enc(adjs).transpose(0, 1); unsqueeze(1).
    return h[:N, :D][:, None, :]


def supervised_graphsage_forward(adj, feats, w_self, w_neigh, *, tm=512, tk=512,
                                 compute_dtype=jnp.bfloat16,
                                 out_dtype=jnp.float32):
    """Convenience one-shot path (prep + kernel). Prefer caching the prep."""
    prep = prepare_graphsage_inputs(adj, feats, w_self, w_neigh, tm=tm, tk=tk,
                                    compute_dtype=compute_dtype)
    return graphsage_encode(prep, out_dtype=out_dtype)


def _xavier_uniform(key, shape):
    fan_out, fan_in = shape
    a = jnp.sqrt(6.0 / (fan_in + fan_out))
    return jax.random.uniform(key, shape, jnp.float32, -a, a)


if __name__ == "__main__":
    num_nodes = 64      # N
    feat_dim = 32       # F
    embed_dim = 64      # D == enc.embed_dim
    num_classes = 7

    key = jax.random.PRNGKey(0)
    k_adj, k_feat, k_ws, k_wn, k_cls = jax.random.split(key, 5)

    adj = (jax.random.uniform(k_adj, (num_nodes, num_nodes)) < 0.1)
    adj = adj.astype(jnp.float32)
    feats = jax.random.normal(k_feat, (num_nodes, feat_dim), jnp.float32)

    w_self = _xavier_uniform(k_ws, (embed_dim, feat_dim))
    w_neigh = _xavier_uniform(k_wn, (embed_dim, feat_dim))

    # SupervisedGraphSage.weight — xavier-initialized but unused in forward(),
    # exactly as in the PyTorch module.
    cls_weight = _xavier_uniform(k_cls, (num_classes, embed_dim))
    del cls_weight

    # Padding / bf16 casting hoisted out of the per-call path (run once).
    prep = prepare_graphsage_inputs(adj, feats, w_self, w_neigh)
    embeds = graphsage_encode(prep)
    jax.block_until_ready(embeds)

    assert embeds.shape == (num_nodes, 1, embed_dim)
    assert embeds.dtype == jnp.float32

    # Reference in plain JAX on the same bf16-rounded inputs (kernel accumulates
    # in f32; the only deltas are the approx reciprocal and the bf16 rounding of
    # the aggregated `neigh` tile before the projection matmul).
    adj_b = adj.astype(jnp.bfloat16).astype(jnp.float32)
    feats_b = feats.astype(jnp.bfloat16).astype(jnp.float32)
    ws_b = w_self.astype(jnp.bfloat16).astype(jnp.float32)
    wn_b = w_neigh.astype(jnp.bfloat16).astype(jnp.float32)
    deg = jnp.maximum(adj_b.sum(-1, keepdims=True), 1.0)
    neigh = ((adj_b @ feats_b) / deg).astype(jnp.bfloat16).astype(jnp.float32)
    ref = jnp.maximum(feats_b @ ws_b.T + neigh @ wn_b.T, 0.0)[:, None, :]
    max_err = float(jnp.max(jnp.abs(embeds - ref)))
    assert jnp.allclose(embeds, ref, atol=5e-2, rtol=5e-2), max_err

    print("KERNEL_OK")
</pallas_src>

<mosaic_0001>
module attributes {stable_mosaic.version = 11 : i64} {
  func.func @_graphsage_kernel(%arg0: i32, %arg1: i32, %arg2: memref<32x128xbf16, #tpu.memory_space<vmem>>, %arg3: memref<128x128xbf16, #tpu.memory_space<vmem>>, %arg4: memref<32x128xbf16, #tpu.memory_space<vmem>>, %arg5: memref<128x128xbf16, #tpu.memory_space<vmem>>, %arg6: memref<128x128xbf16, #tpu.memory_space<vmem>>, %arg7: memref<32x128xf32, #tpu.memory_space<vmem>>, %arg8: memref<32x128xf32, #tpu.memory_space<vmem>>) attributes {dimension_semantics = [#tpu.dimension_semantics<parallel>, #tpu.dimension_semantics<arbitrary>], iteration_bounds = array<i64: 2, 1>, scalar_prefetch = 0 : i64, scratch_operands = 1 : i64, tpu.core_type = #tpu.core_type<tc>, window_params = [{transform_indices = @transform_0, window_bounds = array<i64: 32, 128>}, {transform_indices = @transform_1, window_bounds = array<i64: 128, 128>}, {transform_indices = @transform_2, window_bounds = array<i64: 32, 128>}, {pipeline_mode = #tpu.pipeline_mode<synchronous>, transform_indices = @transform_3, window_bounds = array<i64: 128, 128>}, {pipeline_mode = #tpu.pipeline_mode<synchronous>, transform_indices = @transform_4, window_bounds = array<i64: 128, 128>}, {transform_indices = @transform_5, window_bounds = array<i64: 32, 128>}]} {
    %c0_i32 = arith.constant 0 : i32
    %0 = arith.cmpi eq, %arg1, %c0_i32 : i32
    %1 = arith.extui %0 : i1 to i32
    %c0_i32_0 = arith.constant 0 : i32
    %2 = arith.cmpi ne, %1, %c0_i32_0 : i32
    scf.if %2 {
      %cst_10 = arith.constant 0.000000e+00 : f32
      %12 = vector.broadcast %cst_10 : f32 to vector<32x128xf32>
      %c0_11 = arith.constant 0 : index
      %c0_12 = arith.constant 0 : index
      %13 = vector.load %arg8[%c0_11, %c0_12] : memref<32x128xf32, #tpu.memory_space<vmem>>, vector<32x128xf32>
      tpu.vector_store %arg8[%c0_11, %c0_12], %12 {strides = array<i32>} : memref<32x128xf32, #tpu.memory_space<vmem>>, vector<32x128xf32>,
    } else {
    }
    %c0 = arith.constant 0 : index
    %c0_1 = arith.constant 0 : index
    %3 = vector.load %arg8[%c0, %c0_1] : memref<32x128xf32, #tpu.memory_space<vmem>>, vector<32x128xf32>
    %c0_2 = arith.constant 0 : index
    %c0_3 = arith.constant 0 : index
    %4 = vector.load %arg2[%c0_2, %c0_3] : memref<32x128xbf16, #tpu.memory_space<vmem>>, vector<32x128xbf16>
    %c0_4 = arith.constant 0 : index
    %c0_5 = arith.constant 0 : index
    %5 = vector.load %arg3[%c0_4, %c0_5] : memref<128x128xbf16, #tpu.memory_space<vmem>>, vector<128x128xbf16>
    %cst = arith.constant dense<0.000000e+00> : vector<32x128xf32>
    %6 = tpu.matmul %4, %5, %cst {dimension_numbers = #tpu.dot_dimension_numbers<[1], [0], [0], [1], [0, 0, 1, 1], [], []>} : vector<32x128xbf16>, vector<128x128xbf16>, vector<32x128xf32> -> vector<32x128xf32>
    %7 = arith.addf %3, %6 : vector<32x128xf32>
    %c0_6 = arith.constant 0 : index
    %c0_7 = arith.constant 0 : index
    %8 = vector.load %arg8[%c0_6, %c0_7] : memref<32x128xf32, #tpu.memory_space<vmem>>, vector<32x128xf32>
    tpu.vector_store %arg8[%c0_6, %c0_7], %7 {strides = array<i32>} : memref<32x128xf32, #tpu.memory_space<vmem>>, vector<32x128xf32>,
    %c0_i32_8 = arith.constant 0 : i32
    %9 = arith.cmpi eq, %arg1, %c0_i32_8 : i32
    %10 = arith.extui %9 : i1 to i32
    %c0_i32_9 = arith.constant 0 : i32
    %11 = arith.cmpi ne, %10, %c0_i32_9 : i32
    scf.if %11 {
      %c0_10 = arith.constant 0 : index
      %c0_11 = arith.constant 0 : index
      %12 = vector.load %arg8[%c0_10, %c0_11] : memref<32x128xf32, #tpu.memory_space<vmem>>, vector<32x128xf32>
      %13 = vector.extract_strided_slice %12 {offsets = [0, 127], sizes = [32, 1], strides = [1, 1]} : vector<32x128xf32> to vector<32x1xf32>
      %cst_12 = arith.constant 1.000000e+00 : f32
      %14 = vector.broadcast %cst_12 : f32 to vector<32x1xf32>
      %15 = arith.maximumf %13, %14 : vector<32x1xf32>
      %16 = tpu.reciprocal %15 {approx = true} : vector<32x1xf32> -> vector<32x1xf32>
      %17 = vector.broadcast %16 : vector<32x1xf32> to vector<32x128xf32>
      %18 = arith.mulf %12, %17 : vector<32x128xf32>
      %19 = arith.truncf %18 : vector<32x128xf32> to vector<32x128xbf16>
      %c0_13 = arith.constant 0 : index
      %c0_14 = arith.constant 0 : index
      %20 = vector.load %arg4[%c0_13, %c0_14] : memref<32x128xbf16, #tpu.memory_space<vmem>>, vector<32x128xbf16>
      %c0_15 = arith.constant 0 : index
      %c0_16 = arith.constant 0 : index
      %21 = vector.load %arg5[%c0_15, %c0_16] : memref<128x128xbf16, #tpu.memory_space<vmem>>, vector<128x128xbf16>
      %cst_17 = arith.constant dense<0.000000e+00> : vector<32x128xf32>
      %22 = tpu.matmul %20, %21, %cst_17 {dimension_numbers = #tpu.dot_dimension_numbers<[1], [0], [0], [1], [0, 0, 1, 1], [], []>} : vector<32x128xbf16>, vector<128x128xbf16>, vector<32x128xf32> -> vector<32x128xf32>
      %c0_18 = arith.constant 0 : index
      %c0_19 = arith.constant 0 : index
      %23 = vector.load %arg6[%c0_18, %c0_19] : memref<128x128xbf16, #tpu.memory_space<vmem>>, vector<128x128xbf16>
      %cst_20 = arith.constant dense<0.000000e+00> : vector<32x128xf32>
      %24 = tpu.matmul %19, %23, %cst_20 {dimension_numbers = #tpu.dot_dimension_numbers<[1], [0], [0], [1], [0, 0, 1, 1], [], []>} : vector<32x128xbf16>, vector<128x128xbf16>, vector<32x128xf32> -> vector<32x128xf32>
      %25 = arith.addf %22, %24 : vector<32x128xf32>
      %cst_21 = arith.constant 0.000000e+00 : f32
      %26 = vector.broadcast %cst_21 : f32 to vector<32x128xf32>
      %27 = arith.maximumf %25, %26 : vector<32x128xf32>
      %c0_22 = arith.constant 0 : index
      %c0_23 = arith.constant 0 : index
      %28 = vector.load %arg7[%c0_22, %c0_23] : memref<32x128xf32, #tpu.memory_space<vmem>>, vector<32x128xf32>
      tpu.vector_store %arg7[%c0_22, %c0_23], %27 {strides = array<i32>} : memref<32x128xf32, #tpu.memory_space<vmem>>, vector<32x128xf32>,
    } else {
    }
    return
  }
  func.func @transform_0(%arg0: i32, %arg1: i32) -> (i32, i32) {
    %c0_i32 = arith.constant 0 : i32
    return %arg0, %arg1 : i32, i32
  }
  func.func @transform_1(%arg0: i32, %arg1: i32) -> (i32, i32) {
    %c0_i32 = arith.constant 0 : i32
    %c0_i32_0 = arith.constant 0 : i32
    return %arg1, %c0_i32 : i32, i32
  }
  func.func @transform_2(%arg0: i32, %arg1: i32) -> (i32, i32) {
    %c0_i32 = arith.constant 0 : i32
    %c0_i32_0 = arith.constant 0 : i32
    return %arg0, %c0_i32 : i32, i32
  }
  func.func @transform_3(%arg0: i32, %arg1: i32) -> (i32, i32) {
    %c0_i32 = arith.constant 0 : i32
    %c0_i32_0 = arith.constant 0 : i32
    %c0_i32_1 = arith.constant 0 : i32
    return %c0_i32, %c0_i32_0 : i32, i32
  }
  func.func @transform_4(%arg0: i32, %arg1: i32) -> (i32, i32) {
    %c0_i32 = arith.constant 0 : i32
    %c0_i32_0 = arith.constant 0 : i32
    %c0_i32_1 = arith.constant 0 : i32
    return %c0_i32, %c0_i32_0 : i32, i32
  }
  func.func @transform_5(%arg0: i32, %arg1: i32) -> (i32, i32) {
    %c0_i32 = arith.constant 0 : i32
    %c0_i32_0 = arith.constant 0 : i32
    return %arg0, %c0_i32 : i32, i32
  }
}

</mosaic_0001>

<llo_original>
// kernel: tpu_custom_call.1
$region0: #{tpu_custom_call.1}
  #allocation0 [shape = 'u32[]', space=smem, size = 0x4, offset = 0x4, fixed_abs, tag = 'smem constant byte address 0x4 - core index']
  #allocation1 [shape = 'u32[72,128]{1,0:T(1,128)}', space=vmem, size = 0x9000, scoped, tag = 'internal scratch']
  #allocation2 [shape = 'f32[32,128]{1,0:T(8,128)}', space=vmem, size = 0x4000, scoped, tag = 'scratch operand']
  %s0 = inlined_call_operand.hbm [shape: bf16[64,128], index: 0, kind: input, shape index: {}]
  %s1 = inlined_call_operand.hbm [shape: bf16[128,128], index: 1, kind: input, shape index: {}]
  %s2 = inlined_call_operand.hbm [shape: bf16[64,128], index: 2, kind: input, shape index: {}]
  %s3 = inlined_call_operand.hbm [shape: bf16[128,128], index: 3, kind: input, shape index: {}]
  %s4 = inlined_call_operand.hbm [shape: bf16[128,128], index: 4, kind: input, shape index: {}]
  %s5 = inlined_call_operand.hbm [shape: f32[64,128], index: 5, kind: output, shape index: {}]
  %s6 = sld [smem:[#allocation0]]
  $region81: #{tpu_custom_call.1} parent=0
    _
  %s8 = ssub.s32 1, %s6
  %s9 = scalar_select 0, %s8, %s6
  $region1: #{tpu_custom_call.1} parent=0
    #allocation3 [shape = 'u8[16384]{0}', space=vmem, size = 0x4000, scoped, tag = 'input window, operand 0']
    #allocation4 [shape = 's32[2]{0}', space=sflag, size = 0x8, scoped, tag = 'scoped memory for tpu_custom_call.1']
    #allocation5 [shape = 's32[2]{0}', space=sflag, size = 0x8, scoped, tag = 'scoped memory for tpu_custom_call.1']
    #allocation6 [shape = 'u8[32768]{0}', space=vmem, size = 0x8000, scoped, tag = 'input window, operand 1, single buffered']
    #allocation7 [shape = 's32[1]{0}', space=sflag, size = 0x4, scoped, tag = 'scoped memory for tpu_custom_call.1']
    #allocation8 [shape = 'u8[16384]{0}', space=vmem, size = 0x4000, scoped, tag = 'input window, operand 2']
    #allocation9 [shape = 'u8[32768]{0}', space=vmem, size = 0x8000, scoped, tag = 'input window, operand 3, single buffered']
    #allocation10 [shape = 'u8[32768]{0}', space=vmem, size = 0x8000, scoped, tag = 'input window, operand 4, single buffered']
    #allocation11 [shape = 's32[1]{0}', space=sflag, size = 0x4, scoped, tag = 'scoped memory for tpu_custom_call.1']
    #allocation12 [shape = 'u8[32768]{0}', space=vmem, size = 0x8000, scoped, tag = 'output window, operand 0']
    %10 = vsyncpa [#allocation4], 0
    %s11 = scalar_lea.sflag [#allocation4], 1
    %12 = vsyncpa %s11, 0
    %13 = vsyncpa [#allocation7], 0
    %14 = vsyncpa [#allocation11], 0
    %15 = vsyncpa [#allocation5], 0
    %s16 = scalar_lea.sflag [#allocation5], 1
    %17 = vsyncpa %s16, 0
    loop: start=0, step=1, limit=4
    $region2: #{tpu_custom_call.1} parent=1 // loop_pre_header
      _
    $region3: #{tpu_custom_call.1} parent=1 // loop_header
      %s19 = sphi 0, %s23
      %p20 = scmp.ge.s32.totalorder %s19, 4
      %s26 = sphi 0, %s38
      %s27 = sphi 0, %s34
      %s28 = sphi 0, %s26
      %s29 = sphi 0, %s27
      %s30 = sphi 0, %s28
      %s31 = sphi 0, %s29
      %s43 = sphi 0, %s45
      %s46 = sphi 0, %s43
      %s47 = sphi 0, %s46
      %s63 = sphi 0, %s47
      %s69 = sphi 0, %s71
      %s72 = sphi 0, %s69
      %s73 = sphi 0, %s72
      %s89 = sphi 0, %s73
      %s95 = sphi 0, %s97
      %s98 = sphi 0, %s95
      %s99 = sphi 0, %s98
      %s115 = sphi 0, %s99
      %s119 = sphi 0, %s119
      %s121 = sphi 0, %s119
      %s122 = sphi 0, %s121
      %s136 = sphi 0, %s122
      %s140 = sphi 0, %s140
      %s142 = sphi 0, %s140
      %s143 = sphi 0, %s142
      %s157 = sphi 0, %s143
      %s163 = sphi 0, %s165
      %s166 = sphi 0, %s163
      %s167 = sphi 0, %s166
      %s183 = sphi 0, %s167
    $region4: #{tpu_custom_call.1} parent=1 // loop_header_branch
      %22 = sbr.rel (%p20) target = $region8
    $region5: #{tpu_custom_call.1} parent=1 // loop_body
      %s24 = ssub.s32 %s19, 1
      %s25 = ssub.s32 %s19, 2
      %s32 = sadd.s32 1, %s27
      %p33 = scmp.ge.s32.totalorder %s32, 1
      %s34 = scalar_select %p33, 0, %s32
      %s35 = sadd.s32 1, %s26
      %s36 = scalar_select %p33, %s35, %s26
      %p37 = scmp.ge.s32.totalorder %s36, 2
      %s38 = scalar_select %p37, 0, %s36
      %s39 = ssub.s32 %s26, %s38
      %s40 = ssub.s32 %s27, %s34
      %s41 = sor.u32 %s39, %s40
      %p42 = scmp.eq.s32.totalorder %s41, 0
      %s44 = sadd.s32 %s43, 1
      %s45 = scalar_select %p42, %s43, %s44
      %p48 = pneg %p42
      %p49 = scmp.eq.s32.totalorder %s19, 1
      %p50 = por %p48, %p49
      %p51 = scmp.ne.s32.totalorder %s43, %s46
      %p52 = scmp.eq.s32.totalorder %s19, 0
      %p53 = por %p51, %p52
      %p54 = scmp.ne.s32.totalorder %s43, %s46
      %p55 = scmp.eq.s32.totalorder %s24, 1
      %p56 = por %p54, %p55
      %p57 = scmp.ne.s32.totalorder %s46, %s47
      %p58 = scmp.eq.s32.totalorder %s24, 0
      %p59 = por %p57, %p58
      %p60 = scmp.ne.s32.totalorder %s46, %s47
      %p61 = scmp.eq.s32.totalorder %s25, 1
      %p62 = por %p60, %p61
      %p64 = scmp.ne.s32.totalorder %s47, %s63
      %p65 = scmp.eq.s32.totalorder %s25, 0
      %p66 = por %p64, %p65
      %s67 = ssub.s32 %s27, %s34
      %p68 = scmp.eq.s32.totalorder %s67, 0
      %s70 = sadd.s32 %s69, 1
      %s71 = scalar_select %p68, %s69, %s70
      %p74 = pneg %p68
      %p75 = scmp.eq.s32.totalorder %s19, 1
      %p76 = por %p74, %p75
      %p77 = scmp.ne.s32.totalorder %s69, %s72
      %p78 = scmp.eq.s32.totalorder %s19, 0
      %p79 = por %p77, %p78
      %p80 = scmp.ne.s32.totalorder %s69, %s72
      %p81 = scmp.eq.s32.totalorder %s24, 1
      %p82 = por %p80, %p81
      %p83 = scmp.ne.s32.totalorder %s72, %s73
      %p84 = scmp.eq.s32.totalorder %s24, 0
      %p85 = por %p83, %p84
      %p86 = scmp.ne.s32.totalorder %s72, %s73
      %p87 = scmp.eq.s32.totalorder %s25, 1
      %p88 = por %p86, %p87
      %p90 = scmp.ne.s32.totalorder %s73, %s89
      %p91 = scmp.eq.s32.totalorder %s25, 0
      %p92 = por %p90, %p91
      %s93 = ssub.s32 %s26, %s38
      %p94 = scmp.eq.s32.totalorder %s93, 0
      %s96 = sadd.s32 %s95, 1
      %s97 = scalar_select %p94, %s95, %s96
      %p100 = pneg %p94
      %p101 = scmp.eq.s32.totalorder %s19, 1
      %p102 = por %p100, %p101
      %p103 = scmp.ne.s32.totalorder %s95, %s98
      %p104 = scmp.eq.s32.totalorder %s19, 0
      %p105 = por %p103, %p104
      %p106 = scmp.ne.s32.totalorder %s95, %s98
      %p107 = scmp.eq.s32.totalorder %s24, 1
      %p108 = por %p106, %p107
      %p109 = scmp.ne.s32.totalorder %s98, %s99
      %p110 = scmp.eq.s32.totalorder %s24, 0
      %p111 = por %p109, %p110
      %p112 = scmp.ne.s32.totalorder %s98, %s99
      %p113 = scmp.eq.s32.totalorder %s25, 1
      %p114 = por %p112, %p113
      %p116 = scmp.ne.s32.totalorder %s99, %s115
      %p117 = scmp.eq.s32.totalorder %s25, 0
      %p118 = por %p116, %p117
      %s120 = sadd.s32 %s119, 1
      %p123 = scmp.eq.s32.totalorder %s19, 1
      %p124 = scmp.ne.s32.totalorder %s119, %s121
      %p125 = scmp.eq.s32.totalorder %s19, 0
      %p126 = por %p124, %p125
      %p127 = scmp.ne.s32.totalorder %s119, %s121
      %p128 = scmp.eq.s32.totalorder %s24, 1
      %p129 = por %p127, %p128
      %p130 = scmp.ne.s32.totalorder %s121, %s122
      %p131 = scmp.eq.s32.totalorder %s24, 0
      %p132 = por %p130, %p131
      %p133 = scmp.ne.s32.totalorder %s121, %s122
      %p134 = scmp.eq.s32.totalorder %s25, 1
      %p135 = por %p133, %p134
      %p137 = scmp.ne.s32.totalorder %s122, %s136
      %p138 = scmp.eq.s32.totalorder %s25, 0
      %p139 = por %p137, %p138
      %s141 = sadd.s32 %s140, 1
      %p144 = scmp.eq.s32.totalorder %s19, 1
      %p145 = scmp.ne.s32.totalorder %s140, %s142
      %p146 = scmp.eq.s32.totalorder %s19, 0
      %p147 = por %p145, %p146
      %p148 = scmp.ne.s32.totalorder %s140, %s142
      %p149 = scmp.eq.s32.totalorder %s24, 1
      %p150 = por %p148, %p149
      %p151 = scmp.ne.s32.totalorder %s142, %s143
      %p152 = scmp.eq.s32.totalorder %s24, 0
      %p153 = por %p151, %p152
      %p154 = scmp.ne.s32.totalorder %s142, %s143
      %p155 = scmp.eq.s32.totalorder %s25, 1
      %p156 = por %p154, %p155
      %p158 = scmp.ne.s32.totalorder %s143, %s157
      %p159 = scmp.eq.s32.totalorder %s25, 0
      %p160 = por %p158, %p159
      %s161 = ssub.s32 %s26, %s38
      %p162 = scmp.eq.s32.totalorder %s161, 0
      %s164 = sadd.s32 %s163, 1
      %s165 = scalar_select %p162, %s163, %s164
      %p168 = pneg %p162
      %p169 = scmp.eq.s32.totalorder %s19, 1
      %p170 = por %p168, %p169
      %p171 = scmp.ne.s32.totalorder %s163, %s166
      %p172 = scmp.eq.s32.totalorder %s19, 0
      %p173 = por %p171, %p172
      %p174 = scmp.ne.s32.totalorder %s163, %s166
      %p175 = scmp.eq.s32.totalorder %s24, 1
      %p176 = por %p174, %p175
      %p177 = scmp.ne.s32.totalorder %s166, %s167
      %p178 = scmp.eq.s32.totalorder %s24, 0
      %p179 = por %p177, %p178
      %p180 = scmp.ne.s32.totalorder %s166, %s167
      %p181 = scmp.eq.s32.totalorder %s25, 1
      %p182 = por %p180, %p181
      %p184 = scmp.ne.s32.totalorder %s167, %s183
      %p185 = scmp.eq.s32.totalorder %s25, 0
      %p186 = por %p184, %p185
      %p187 = scmp.le.s32.totalorder 1, %s19
      %p188 = scmp.lt.s32.totalorder %s19, 3
      %p189 = pnand %p187, %p188
      %p190 = pneg %p189
      // Predicated region
      $region9: #{tpu_custom_call.1} parent=5 // pred_check
        _
      $region10: #{tpu_custom_call.1} parent=5 // pred_check_branch
        %192 = sbr.rel (%p189) target = $region12
      $region11: #{tpu_custom_call.1} parent=5 // pred_region
        %s193 = ssub.s32 %s19, 1
        // Predicated region
        $region13: #{tpu_custom_call.1} parent=11 // pred_check
          %p194 = pneg %p85
        $region14: #{tpu_custom_call.1} parent=11 // pred_check_branch
          %196 = sbr.rel (%p194) target = $region16
        $region15: #{tpu_custom_call.1} parent=11 // pred_region
          %s197 = smul.u32 16, %s29
          %199 = vsyncadd [#allocation7], 0
          %s200 = smul.addr %s197, 4
          %s201 = scalar_lea.hbm %s1, %s200
          %s202 = sshll.u32 %s201, 4
          %s203 = int_to_ptr.hbm [resolvable:$true] %s202
          %s204 = sshll.u32 [#allocation6], 4
          %s205 = int_to_ptr.vmem [resolvable:$true] %s204
          %210 = dma.hbm_to_vmem [thread:$0]  %s203, 1024, %s205, [#allocation7], 64, 64, 4
        $region16: #{tpu_custom_call.1} parent=11 // pred_fallthru
          _
        // Predicated region
        $region17: #{tpu_custom_call.1} parent=11 // pred_check
          %p211 = pneg %p132
        $region18: #{tpu_custom_call.1} parent=11 // pred_check_branch
          %213 = sbr.rel (%p211) target = $region20
        $region19: #{tpu_custom_call.1} parent=11 // pred_region
          %215 = vsyncadd [#allocation7], 0
          %s216 = sshll.u32 %s3, 4
          %s217 = int_to_ptr.hbm [resolvable:$true] %s216
          %s218 = sshll.u32 [#allocation9], 4
          %s219 = int_to_ptr.vmem [resolvable:$true] %s218
          %224 = dma.hbm_to_vmem [thread:$0]  %s217, 1024, %s219, [#allocation7], 64, 64, 4
        $region20: #{tpu_custom_call.1} parent=11 // pred_fallthru
          _
        // Predicated region
        $region21: #{tpu_custom_call.1} parent=11 // pred_check
          %p225 = pneg %p153
        $region22: #{tpu_custom_call.1} parent=11 // pred_check_branch
          %227 = sbr.rel (%p225) target = $region24
        $region23: #{tpu_custom_call.1} parent=11 // pred_region
          %229 = vsyncadd [#allocation11], 0
          %s230 = sshll.u32 %s4, 4
          %s231 = int_to_ptr.hbm [resolvable:$true] %s230
          %s232 = sshll.u32 [#allocation10], 4
          %s233 = int_to_ptr.vmem [resolvable:$true] %s232
          %238 = dma.hbm_to_vmem [thread:$0]  %s231, 1024, %s233, [#allocation11], 64, 64, 4
        $region24: #{tpu_custom_call.1} parent=11 // pred_fallthru
          _
      $region12: #{tpu_custom_call.1} parent=5 // pred_fallthru
        _
      %p239 = scmp.lt.s32.totalorder %s19, 2
      // Predicated region
      $region25: #{tpu_custom_call.1} parent=5 // pred_check
        %p240 = pneg %p239
      $region26: #{tpu_custom_call.1} parent=5 // pred_check_branch
        %242 = sbr.rel (%p240) target = $region28
      $region27: #{tpu_custom_call.1} parent=5 // pred_region
        // Predicated region
        $region29: #{tpu_custom_call.1} parent=27 // pred_check
          %p243 = pneg %p53
        $region30: #{tpu_custom_call.1} parent=27 // pred_check_branch
          %245 = sbr.rel (%p243) target = $region32
        $region31: #{tpu_custom_call.1} parent=27 // pred_region
          %s246 = sand.u32 %s19, 1
          %s247 = scalar_lea.sflag [#allocation4], %s246
          %s248 = sand.u32 %s43, 1
          %s249 = smul.addr %s248, 16
          %s250 = scalar_lea.vmem [#allocation3], %s249
          %s251 = smul.u32 4, %s26
          %253 = vsyncadd %s247, 0
          %s254 = sadd.s32 %s27, %s251
          %s255 = smul.addr %s254, 4
          %s256 = scalar_lea.hbm %s0, %s255
          %s257 = sshll.u32 %s256, 4
          %s258 = int_to_ptr.hbm [resolvable:$true] %s257
          %s259 = sshll.u32 %s250, 4
          %s260 = int_to_ptr.vmem [resolvable:$true] %s259
          %265 = dma.hbm_to_vmem [thread:$0]  %s258, 256, %s260, %s247, 64, 64, 4
        $region32: #{tpu_custom_call.1} parent=27 // pred_fallthru
          _
        // Predicated region
        $region33: #{tpu_custom_call.1} parent=27 // pred_check
          %p266 = pneg %p105
        $region34: #{tpu_custom_call.1} parent=27 // pred_check_branch
          %268 = sbr.rel (%p266) target = $region36
        $region35: #{tpu_custom_call.1} parent=27 // pred_region
          %s269 = sand.u32 %s19, 1
          %s270 = scalar_lea.sflag [#allocation4], %s269
          %s271 = sand.u32 %s95, 1
          %s272 = smul.addr %s271, 16
          %s273 = scalar_lea.vmem [#allocation8], %s272
          %s274 = smul.u32 4, %s26
          %276 = vsyncadd %s270, 0
          %s277 = smul.addr %s274, 4
          %s278 = scalar_lea.hbm %s2, %s277
          %s279 = sshll.u32 %s278, 4
          %s280 = int_to_ptr.hbm [resolvable:$true] %s279
          %s281 = sshll.u32 %s273, 4
          %s282 = int_to_ptr.vmem [resolvable:$true] %s281
          %287 = dma.hbm_to_vmem [thread:$0]  %s280, 256, %s282, %s270, 64, 64, 4
        $region36: #{tpu_custom_call.1} parent=27 // pred_fallthru
          _
      $region28: #{tpu_custom_call.1} parent=5 // pred_fallthru
        _
      %p288 = scmp.le.s32.totalorder 1, %s19
      %p289 = scmp.lt.s32.totalorder %s19, 3
      %p290 = pnand %p288, %p289
      %p291 = pneg %p290
      // Predicated region
      $region37: #{tpu_custom_call.1} parent=5 // pred_check
        _
      $region38: #{tpu_custom_call.1} parent=5 // pred_check_branch
        %293 = sbr.rel (%p290) target = $region40
      $region39: #{tpu_custom_call.1} parent=5 // pred_region
        %s294 = ssub.s32 %s19, 1
        %s295 = sand.u32 %s24, 1
        %s296 = scalar_lea.sflag [#allocation4], %s295
        %s297 = sand.u32 %s46, 1
        %s298 = smul.addr %s297, 16
        %s299 = scalar_lea.vmem [#allocation3], %s298
        // Predicated region
        $region41: #{tpu_custom_call.1} parent=39 // pred_check
          %p300 = pneg %p59
        $region42: #{tpu_custom_call.1} parent=39 // pred_check_branch
          %302 = sbr.rel (%p300) target = $region44
        $region43: #{tpu_custom_call.1} parent=39 // pred_region
          %304 = dma.done %s296, 256
        $region44: #{tpu_custom_call.1} parent=39 // pred_fallthru
          _
        // Predicated region
        $region45: #{tpu_custom_call.1} parent=39 // pred_check
          %p305 = pneg %p85
        $region46: #{tpu_custom_call.1} parent=39 // pred_check_branch
          %307 = sbr.rel (%p305) target = $region48
        $region47: #{tpu_custom_call.1} parent=39 // pred_region
          %309 = dma.done [#allocation7], 1024
        $region48: #{tpu_custom_call.1} parent=39 // pred_fallthru
          _
        %s310 = sand.u32 %s24, 1
        %s311 = scalar_lea.sflag [#allocation4], %s310
        %s312 = sand.u32 %s98, 1
        %s313 = smul.addr %s312, 16
        %s314 = scalar_lea.vmem [#allocation8], %s313
        // Predicated region
        $region49: #{tpu_custom_call.1} parent=39 // pred_check
          %p315 = pneg %p111
        $region50: #{tpu_custom_call.1} parent=39 // pred_check_branch
          %317 = sbr.rel (%p315) target = $region52
        $region51: #{tpu_custom_call.1} parent=39 // pred_region
          %319 = dma.done %s311, 256
        $region52: #{tpu_custom_call.1} parent=39 // pred_fallthru
          _
        // Predicated region
        $region53: #{tpu_custom_call.1} parent=39 // pred_check
          %p320 = pneg %p132
        $region54: #{tpu_custom_call.1} parent=39 // pred_check_branch
          %322 = sbr.rel (%p320) target = $region56
        $region55: #{tpu_custom_call.1} parent=39 // pred_region
          %324 = dma.done [#allocation7], 1024
        $region56: #{tpu_custom_call.1} parent=39 // pred_fallthru
          _
        // Predicated region
        $region57: #{tpu_custom_call.1} parent=39 // pred_check
          %p325 = pneg %p153
        $region58: #{tpu_custom_call.1} parent=39 // pred_check_branch
          %327 = sbr.rel (%p325) target = $region60
        $region59: #{tpu_custom_call.1} parent=39 // pred_region
          %329 = dma.done [#allocation11], 1024
        $region60: #{tpu_custom_call.1} parent=39 // pred_fallthru
          _
        %s330 = sand.u32 %s24, 1
        %s331 = scalar_lea.sflag [#allocation4], %s330
        %s332 = sand.u32 %s46, 1
        %s333 = smul.addr %s332, 16
        %s334 = scalar_lea.vmem [#allocation3], %s333
        %p335 = pneg %p59
        %p336 = pneg %p56
        %p337 = pneg %p85
        %p338 = pneg %p82
        %s339 = sand.u32 %s24, 1
        %s340 = scalar_lea.sflag [#allocation4], %s339
        %s341 = sand.u32 %s98, 1
        %s342 = smul.addr %s341, 16
        %s343 = scalar_lea.vmem [#allocation8], %s342
        %p344 = pneg %p111
        %p345 = pneg %p108
        %p346 = pneg %p132
        %p347 = pneg %p129
        %p348 = pneg %p153
        %p349 = pneg %p150
        %p350 = pneg %p179
        %p351 = pneg %p176
        %s352 = sand.u32 %s166, 1
        %s353 = scalar_lea.sflag [#allocation5], %s352
        %s354 = sand.u32 %s166, 1
        %s355 = smul.addr %s354, 32
        %s356 = scalar_lea.vmem [#allocation12], %s355
        %s357 = smul.u32 4, %s28
        %s358 = smul.u32 16, %s29
        %s359 = smul.u32 4, %s28
        %s360 = smul.u32 4, %s28
        %p361 = scmp.eq.s32.totalorder %s29, 0
        // Predicated region
        $region61: #{tpu_custom_call.1} parent=39 // pred_check
          %p362 = pneg %p361
        $region62: #{tpu_custom_call.1} parent=39 // pred_check_branch
          %364 = sbr.rel (%p362) target = $region64
        $region63: #{tpu_custom_call.1} parent=39 // pred_region
          %365 = vst [vmem:[#allocation2] sm:$0xff] 0.0
          %366 = vst [vmem:[#allocation2 + $0x8] sm:$0xff] 0.0
          %367 = vst [vmem:[#allocation2 + $0x10] sm:$0xff] 0.0
          %368 = vst [vmem:[#allocation2 + $0x18] sm:$0xff] 0.0
        $region64: #{tpu_custom_call.1} parent=39 // pred_fallthru
          _
        %v369 = vld [vmem:[#allocation2] sm:$0xff]
        %v370 = vld [vmem:[#allocation2 + $0x8] sm:$0xff]
        %v371 = vld [vmem:[#allocation2 + $0x10] sm:$0xff]
        %v372 = vld [vmem:[#allocation2 + $0x18] sm:$0xff]
        %v373 = vld [vmem:[%s299] sm:$0xf]
        %v374 = vld [vmem:[%s299 + $0x4] sm:$0xf]
        %v375 = vld [vmem:[%s299 + $0x8] sm:$0xf]
        %v376 = vld [vmem:[%s299 + $0xc] sm:$0xf]
        %v377 = vld [vmem:[#allocation6] sm:$0xf]
        %v378 = vld [vmem:[#allocation6 + $0x4] sm:$0xf]
        %v379 = vld [vmem:[#allocation6 + $0x8] sm:$0xf]
        %v380 = vld [vmem:[#allocation6 + $0xc] sm:$0xf]
        %v381 = vld [vmem:[#allocation6 + $0x10] sm:$0xf]
        %v382 = vld [vmem:[#allocation6 + $0x14] sm:$0xf]
        %v383 = vld [vmem:[#allocation6 + $0x18] sm:$0xf]
        %v384 = vld [vmem:[#allocation6 + $0x1c] sm:$0xf]
        %v385 = vld [vmem:[#allocation6 + $0x20] sm:$0xf]
        %v386 = vld [vmem:[#allocation6 + $0x24] sm:$0xf]
        %v387 = vld [vmem:[#allocation6 + $0x28] sm:$0xf]
        %v388 = vld [vmem:[#allocation6 + $0x2c] sm:$0xf]
        %v389 = vld [vmem:[#allocation6 + $0x30] sm:$0xf]
        %v390 = vld [vmem:[#allocation6 + $0x34] sm:$0xf]
        %v391 = vld [vmem:[#allocation6 + $0x38] sm:$0xf]
        %v392 = vld [vmem:[#allocation6 + $0x3c] sm:$0xf]
        %v397 = vunpack.c.l.b16 %v373
        %v398 = vunpack.c.l.b16 %v374
        %v399 = vunpack.c.l.b16 %v375
        %v400 = vunpack.c.l.b16 %v376
        %v401 = vpack.c.b16 %v398, %v397
        %v402 = vpack.c.b16 %v400, %v399
        %v421 = vunpack.c.l.b16 %v377
        %v422 = vunpack.c.l.b16 %v378
        %v423 = vunpack.c.l.b16 %v379
        %v424 = vunpack.c.l.b16 %v380
        %v425 = vunpack.c.l.b16 %v381
        %v426 = vunpack.c.l.b16 %v382
        %v427 = vunpack.c.l.b16 %v383
        %v428 = vunpack.c.l.b16 %v384
        %v429 = vunpack.c.l.b16 %v385
        %v430 = vunpack.c.l.b16 %v386
        %v431 = vunpack.c.l.b16 %v387
        %v432 = vunpack.c.l.b16 %v388
        %v433 = vunpack.c.l.b16 %v389
        %v434 = vunpack.c.l.b16 %v390
        %v435 = vunpack.c.l.b16 %v391
        %v436 = vunpack.c.l.b16 %v392
        %v437 = vpack.c.b16 %v422, %v421
        %v438 = vpack.c.b16 %v424, %v423
        %v439 = vpack.c.b16 %v426, %v425
        %v440 = vpack.c.b16 %v428, %v427
        %v441 = vpack.c.b16 %v430, %v429
        %v442 = vpack.c.b16 %v432, %v431
        %v443 = vpack.c.b16 %v434, %v433
        %v444 = vpack.c.b16 %v436, %v435
        %453 = vmatpush.bf16.msra.mxu0 %v444
        %454 = vmatpush.bf16.msra.mxu0 %v443
        %455 = vmatpush.bf16.msra.mxu0 %v442
        %456 = vmatpush.bf16.msra.mxu0 %v441
        %457 = vmatpush.bf16.msra.mxu0 %v440
        %458 = vmatpush.bf16.msra.mxu0 %v439
        %459 = vmatpush.bf16.msra.mxu0 %v438
        %460 = vmatpush.bf16.msra.mxu0 %v437
        %461 = vmatmul.bf16.gmra.mxu0 %v401
        %v462 = vpop.f32.mrf.mxu0
        %v463 = vadd.f32 0.0, %v462
        %v464 = vpop.f32.mrf.mxu0
        %v465 = vadd.f32 0.0, %v464
        %466 = vmatmul.bf16.gmra.mxu0 %v402
        %v467 = vpop.f32.mrf.mxu0
        %v468 = vadd.f32 0.0, %v467
        %v469 = vpop.f32.mrf.mxu0
        %v470 = vadd.f32 0.0, %v469
        %471 = vdwg.mxu0
        %v472 = vadd.f32 %v369, %v463
        %v473 = vadd.f32 %v370, %v465
        %v474 = vadd.f32 %v371, %v468
        %v475 = vadd.f32 %v372, %v470
        %476 = vst [vmem:[#allocation2] sm:$0xff] %v472
        %477 = vst [vmem:[#allocation2 + $0x8] sm:$0xff] %v473
        %478 = vst [vmem:[#allocation2 + $0x10] sm:$0xff] %v474
        %479 = vst [vmem:[#allocation2 + $0x18] sm:$0xff] %v475
        // Predicated region
        $region65: #{tpu_custom_call.1} parent=39 // pred_check
          %p480 = pneg %p361
        $region66: #{tpu_custom_call.1} parent=39 // pred_check_branch
          %482 = sbr.rel (%p480) target = $region68
        $region67: #{tpu_custom_call.1} parent=39 // pred_region
          %v483 = vld [vmem:[#allocation2] sm:$0xff]
          %v484 = vld [vmem:[#allocation2 + $0x8] sm:$0xff]
          %v485 = vld [vmem:[#allocation2 + $0x10] sm:$0xff]
          %v486 = vld [vmem:[#allocation2 + $0x18] sm:$0xff]
          %v487 = vmax.f32 %v483, 1.0
          %v488 = vmax.f32 %v484, 1.0
          %v489 = vmax.f32 %v485, 1.0
          %v490 = vmax.f32 %v486, 1.0
          %v491 = vrcp.pop %v487
          %v492 = vrcp.pop %v488
          %v493 = vrcp.pop %v489
          %v494 = vrcp.pop %v490
          %496 = vset.pattern.permute.xlu0 127
          %497 = vperm.xlu0 %496, %v491
          %v498 = vpop.permute.xlu0 %497
          %501 = vset.pattern.permute.xlu0 127
          %502 = vperm.xlu0 %501, %v492
          %v503 = vpop.permute.xlu0 %502
          %506 = vset.pattern.permute.xlu0 127
          %507 = vperm.xlu0 %506, %v493
          %v508 = vpop.permute.xlu0 %507
          %511 = vset.pattern.permute.xlu0 127
          %512 = vperm.xlu0 %511, %v494
          %v513 = vpop.permute.xlu0 %512
          %v515 = vmul.f32 %v483, %v498
          %v516 = vmul.f32 %v484, %v503
          %v517 = vmul.f32 %v485, %v508
          %v518 = vmul.f32 %v486, %v513
          %v519 = vpack.c.bf16 %v516, %v515
          %v520 = vpack.c.bf16 %v518, %v517
          %v521 = vld [vmem:[%s314] sm:$0xf]
          %v522 = vld [vmem:[%s314 + $0x4] sm:$0xf]
          %v523 = vld [vmem:[%s314 + $0x8] sm:$0xf]
          %v524 = vld [vmem:[%s314 + $0xc] sm:$0xf]
          %v525 = vld [vmem:[#allocation9] sm:$0xf]
          %v526 = vld [vmem:[#allocation9 + $0x4] sm:$0xf]
          %v527 = vld [vmem:[#allocation9 + $0x8] sm:$0xf]
          %v528 = vld [vmem:[#allocation9 + $0xc] sm:$0xf]
          %v529 = vld [vmem:[#allocation9 + $0x10] sm:$0xf]
          %v530 = vld [vmem:[#allocation9 + $0x14] sm:$0xf]
          %v531 = vld [vmem:[#allocation9 + $0x18] sm:$0xf]
          %v532 = vld [vmem:[#allocation9 + $0x1c] sm:$0xf]
          %v533 = vld [vmem:[#allocation9 + $0x20] sm:$0xf]
          %v534 = vld [vmem:[#allocation9 + $0x24] sm:$0xf]
          %v535 = vld [vmem:[#allocation9 + $0x28] sm:$0xf]
          %v536 = vld [vmem:[#allocation9 + $0x2c] sm:$0xf]
          %v537 = vld [vmem:[#allocation9 + $0x30] sm:$0xf]
          %v538 = vld [vmem:[#allocation9 + $0x34] sm:$0xf]
          %v539 = vld [vmem:[#allocation9 + $0x38] sm:$0xf]
          %v540 = vld [vmem:[#allocation9 + $0x3c] sm:$0xf]
          %v541 = vld [vmem:[#allocation10] sm:$0xf]
          %v542 = vld [vmem:[#allocation10 + $0x4] sm:$0xf]
          %v543 = vld [vmem:[#allocation10 + $0x8] sm:$0xf]
          %v544 = vld [vmem:[#allocation10 + $0xc] sm:$0xf]
          %v545 = vld [vmem:[#allocation10 + $0x10] sm:$0xf]
          %v546 = vld [vmem:[#allocation10 + $0x14] sm:$0xf]
          %v547 = vld [vmem:[#allocation10 + $0x18] sm:$0xf]
          %v548 = vld [vmem:[#allocation10 + $0x1c] sm:$0xf]
          %v549 = vld [vmem:[#allocation10 + $0x20] sm:$0xf]
          %v550 = vld [vmem:[#allocation10 + $0x24] sm:$0xf]
          %v551 = vld [vmem:[#allocation10 + $0x28] sm:$0xf]
          %v552 = vld [vmem:[#allocation10 + $0x2c] sm:$0xf]
          %v553 = vld [vmem:[#allocation10 + $0x30] sm:$0xf]
          %v554 = vld [vmem:[#allocation10 + $0x34] sm:$0xf]
          %v555 = vld [vmem:[#allocation10 + $0x38] sm:$0xf]
          %v556 = vld [vmem:[#allocation10 + $0x3c] sm:$0xf]
          %v573 = vunpack.c.l.b16 %v541
          %v574 = vunpack.c.l.b16 %v542
          %v575 = vunpack.c.l.b16 %v543
          %v576 = vunpack.c.l.b16 %v544
          %v577 = vunpack.c.l.b16 %v545
          %v578 = vunpack.c.l.b16 %v546
          %v579 = vunpack.c.l.b16 %v547
          %v580 = vunpack.c.l.b16 %v548
          %v581 = vunpack.c.l.b16 %v549
          %v582 = vunpack.c.l.b16 %v550
          %v583 = vunpack.c.l.b16 %v551
          %v584 = vunpack.c.l.b16 %v552
          %v585 = vunpack.c.l.b16 %v553
          %v586 = vunpack.c.l.b16 %v554
          %v587 = vunpack.c.l.b16 %v555
          %v588 = vunpack.c.l.b16 %v556
          %v589 = vpack.c.b16 %v574, %v573
          %v590 = vpack.c.b16 %v576, %v575
          %v591 = vpack.c.b16 %v578, %v577
          %v592 = vpack.c.b16 %v580, %v579
          %v593 = vpack.c.b16 %v582, %v581
          %v594 = vpack.c.b16 %v584, %v583
          %v595 = vpack.c.b16 %v586, %v585
          %v596 = vpack.c.b16 %v588, %v587
          %605 = vmatpush.bf16.msra.mxu0 %v596
          %606 = vmatpush.bf16.msra.mxu0 %v595
          %607 = vmatpush.bf16.msra.mxu0 %v594
          %608 = vmatpush.bf16.msra.mxu0 %v593
          %609 = vmatpush.bf16.msra.mxu0 %v592
          %610 = vmatpush.bf16.msra.mxu0 %v591
          %611 = vmatpush.bf16.msra.mxu0 %v590
          %612 = vmatpush.bf16.msra.mxu0 %v589
          %613 = vmatmul.bf16.gmra.mxu0 %v519
          %v614 = vpop.f32.mrf.mxu0
          %v615 = vadd.f32 0.0, %v614
          %v616 = vpop.f32.mrf.mxu0
          %v617 = vadd.f32 0.0, %v616
          %618 = vmatmul.bf16.gmra.mxu0 %v520
          %v619 = vpop.f32.mrf.mxu0
          %v620 = vadd.f32 0.0, %v619
          %v621 = vpop.f32.mrf.mxu0
          %v622 = vadd.f32 0.0, %v621
          %623 = vdwg.mxu0
          %v628 = vunpack.c.l.b16 %v521
          %v629 = vunpack.c.l.b16 %v522
          %v630 = vunpack.c.l.b16 %v523
          %v631 = vunpack.c.l.b16 %v524
          %v632 = vpack.c.b16 %v629, %v628
          %v633 = vpack.c.b16 %v631, %v630
          %v652 = vunpack.c.l.b16 %v525
          %v653 = vunpack.c.l.b16 %v526
          %v654 = vunpack.c.l.b16 %v527
          %v655 = vunpack.c.l.b16 %v528
          %v656 = vunpack.c.l.b16 %v529
          %v657 = vunpack.c.l.b16 %v530
          %v658 = vunpack.c.l.b16 %v531
          %v659 = vunpack.c.l.b16 %v532
          %v660 = vunpack.c.l.b16 %v533
          %v661 = vunpack.c.l.b16 %v534
          %v662 = vunpack.c.l.b16 %v535
          %v663 = vunpack.c.l.b16 %v536
          %v664 = vunpack.c.l.b16 %v537
          %v665 = vunpack.c.l.b16 %v538
          %v666 = vunpack.c.l.b16 %v539
          %v667 = vunpack.c.l.b16 %v540
          %v668 = vpack.c.b16 %v653, %v652
          %v669 = vpack.c.b16 %v655, %v654
          %v670 = vpack.c.b16 %v657, %v656
          %v671 = vpack.c.b16 %v659, %v658
          %v672 = vpack.c.b16 %v661, %v660
          %v673 = vpack.c.b16 %v663, %v662
          %v674 = vpack.c.b16 %v665, %v664
          %v675 = vpack.c.b16 %v667, %v666
          %684 = vmatpush.bf16.msra.mxu0 %v675
          %685 = vmatpush.bf16.msra.mxu0 %v674
          %686 = vmatpush.bf16.msra.mxu0 %v673
          %687 = vmatpush.bf16.msra.mxu0 %v672
          %688 = vmatpush.bf16.msra.mxu0 %v671
          %689 = vmatpush.bf16.msra.mxu0 %v670
          %690 = vmatpush.bf16.msra.mxu0 %v669
          %691 = vmatpush.bf16.msra.mxu0 %v668
          %692 = vmatmul.bf16.gmra.mxu0 %v632
          %v693 = vpop.f32.mrf.mxu0
          %v694 = vadd.f32 %v615, %v693
          %v695 = vpop.f32.mrf.mxu0
          %v696 = vadd.f32 %v617, %v695
          %697 = vmatmul.bf16.gmra.mxu0 %v633
          %v698 = vpop.f32.mrf.mxu0
          %v699 = vadd.f32 %v620, %v698
          %v700 = vpop.f32.mrf.mxu0
          %v701 = vadd.f32 %v622, %v700
          %702 = vdwg.mxu0
          %v703 = vmax.f32 %v694, 0.0
          %v704 = vmax.f32 %v696, 0.0
          %v705 = vmax.f32 %v699, 0.0
          %v706 = vmax.f32 %v701, 0.0
          %707 = vst [vmem:[%s356] sm:$0xff] %v703
          %708 = vst [vmem:[%s356 + $0x8] sm:$0xff] %v704
          %709 = vst [vmem:[%s356 + $0x10] sm:$0xff] %v705
          %710 = vst [vmem:[%s356 + $0x18] sm:$0xff] %v706
        $region68: #{tpu_custom_call.1} parent=39 // pred_fallthru
          _
        %s711 = sand.u32 %s166, 1
        %s712 = scalar_lea.sflag [#allocation5], %s711
        %s713 = sand.u32 %s166, 1
        %s714 = smul.addr %s713, 32
        %s715 = scalar_lea.vmem [#allocation12], %s714
        // Predicated region
        $region69: #{tpu_custom_call.1} parent=39 // pred_check
          %p716 = pneg %p176
        $region70: #{tpu_custom_call.1} parent=39 // pred_check_branch
          %718 = sbr.rel (%p716) target = $region72
        $region71: #{tpu_custom_call.1} parent=39 // pred_region
          %s719 = smul.u32 4, %s28
          %721 = vsyncadd %s712, 0
          %s722 = smul.addr %s719, 8
          %s723 = scalar_lea.hbm %s5, %s722
          %s724 = sshll.u32 %s715, 4
          %s725 = int_to_ptr.vmem [resolvable:$true] %s724
          %s726 = sshll.u32 %s723, 4
          %s727 = int_to_ptr.hbm [resolvable:$true] %s726
          %732 = dma.vmem_to_hbm [thread:$0]  %s725, 512, %s727, %s712, 128, 128, 8
        $region72: #{tpu_custom_call.1} parent=39 // pred_fallthru
          _
      $region40: #{tpu_custom_call.1} parent=5 // pred_fallthru
        _
      %p733 = scmp.le.s32.totalorder 2, %s19
      // Predicated region
      $region73: #{tpu_custom_call.1} parent=5 // pred_check
        %p734 = pneg %p733
      $region74: #{tpu_custom_call.1} parent=5 // pred_check_branch
        %736 = sbr.rel (%p734) target = $region76
      $region75: #{tpu_custom_call.1} parent=5 // pred_region
        %s737 = ssub.s32 %s19, 2
        // Predicated region
        $region77: #{tpu_custom_call.1} parent=75 // pred_check
          %p738 = pneg %p182
        $region78: #{tpu_custom_call.1} parent=75 // pred_check_branch
          %740 = sbr.rel (%p738) target = $region80
        $region79: #{tpu_custom_call.1} parent=75 // pred_region
          %s741 = sand.u32 %s167, 1
          %s742 = scalar_lea.sflag [#allocation5], %s741
          %s743 = sand.u32 %s167, 1
          %s744 = smul.addr %s743, 32
          %s745 = scalar_lea.vmem [#allocation12], %s744
          %747 = dma.done %s742, 512
        $region80: #{tpu_custom_call.1} parent=75 // pred_fallthru
          _
      $region76: #{tpu_custom_call.1} parent=5 // pred_fallthru
        _
    $region6: #{tpu_custom_call.1} parent=1 // loop_footer
      %s23 = sadd.s32 1, %s19
    $region7: #{tpu_custom_call.1} parent=1 // loop_footer_branch
      %18 = sbr.rel target = $region3
    $region8: #{tpu_custom_call.1} parent=1 // loop_exit
      _
    %748 = vsyncpa [#allocation4], 1
    %s749 = scalar_lea.sflag [#allocation4], 1
    %750 = vsyncpa %s749, 1
    %751 = vsyncpa [#allocation7], 1
    %752 = vsyncpa [#allocation11], 1
    %753 = vsyncpa [#allocation5], 1
    %s754 = scalar_lea.sflag [#allocation5], 1
    %755 = vsyncpa %s754, 1

</llo_original>
